<compile_context>
chip_gen: v5e
topology: v5e:2x2
jax: 0.10.0
libtpu: 0.0.40
codegen_flags: <defaults>
</compile_context>

<pallas_src>
import jax
import jax.numpy as jnp
from jax.experimental import pallas as pl
from jax.experimental.pallas import tpu as pltpu


def _round_up(n, m):
    return ((n + m - 1) // m) * m


def _choose_tb(B, tb_max=4096):
    """Batch (lane) tile: multiple of 256, capped by ~B/2 so large batches get
    >=2 grid steps (v7x has 2 TensorCores) and per-call padding stays bounded."""
    half = _round_up(max(B // 2, 1), 256)
    return max(256, min(tb_max, half))


def _domain_enc_kernel(
    xin_ref,   # (3, TB)   feature-major packed [x0; x1; domain]
    wcb_ref,   # (60, 8)   cols 0:3 = WcatT, 3 = bcat, 4 = b2, 5 = b3, 6 = bf(pad)
    w2t_ref,   # (60, 60)  fc2 weight, transposed (out, in)
    w3t_ref,   # (60, 60)  fc3 weight, transposed
    wft_ref,   # (20, 60)  fc_final weight, transposed
    o_ref,     # (20, TB)
):
    x0 = xin_ref[0:1, :]          # (1, TB)
    x1 = xin_ref[1:2, :]          # (1, TB)
    xd = xin_ref[2:3, :]          # (1, TB)

    wcb = wcb_ref[...]
    wc0 = wcb[:, 0:1]             # (60, 1)
    wc1 = wcb[:, 1:2]
    wc2 = wcb[:, 2:3]
    bcat = wcb[:, 3:4]            # (60, 1)
    b2 = wcb[:, 4:5]
    b3 = wcb[:, 5:6]
    bf = wcb[0:20, 6:7]           # (20, 1)

    # Fused fc1 + fc1_var (block-diagonal) + relu via VPU broadcast FMAs.
    # Exactly cat(relu(fc1(x)), relu(fc1_var(d))) because the off-blocks of
    # wc0/wc1/wc2 are zero and ReLU is elementwise. No MXU for K=3.
    h = jnp.maximum(wc0 * x0 + wc1 * x1 + wc2 * xd + bcat, 0.0)      # (60, TB)

    # fc2 + relu, fc3 + relu, fc_final + relu — batch on the MXU N dimension.
    h = jnp.maximum(
        jnp.dot(w2t_ref[...], h, preferred_element_type=jnp.float32) + b2, 0.0)
    h = jnp.maximum(
        jnp.dot(w3t_ref[...], h, preferred_element_type=jnp.float32) + b3, 0.0)
    out = jnp.maximum(
        jnp.dot(wft_ref[...], h, preferred_element_type=jnp.float32) + bf, 0.0)

    o_ref[...] = out.astype(o_ref.dtype)


def prepare_params(params):
    """One-time packing of parameters for the kernel.

    params: dict of (W, b) pairs, W stored as (in_features, out_features).
    Returns dict of packed/transposed arrays consumed by the forward fns.
    """
    w1, b1 = params["fc1"]          # (2, 50), (50,)
    w1v, b1v = params["fc1_var"]    # (1, 10), (10,)
    w2, b2 = params["fc2"]          # (60, 60), (60,)
    w3, b3 = params["fc3"]          # (60, 60), (60,)
    wf, bf = params["fc_final"]     # (60, 20), (20,)

    # Transposed fused first layer: rows 0:50 <- fc1 branch, rows 50:60 <- fc1_var.
    wcat_t = jnp.zeros((60, 3), jnp.float32)
    wcat_t = wcat_t.at[0:50, 0:2].set(w1.T.astype(jnp.float32))
    wcat_t = wcat_t.at[50:60, 2:3].set(w1v.T.astype(jnp.float32))
    bcat = jnp.concatenate([b1, b1v]).astype(jnp.float32)            # (60,)

    # Single small operand: [WcatT | bcat | b2 | b3 | bf(padded) | 0].
    wcb = jnp.zeros((60, 8), jnp.float32)
    wcb = wcb.at[:, 0:3].set(wcat_t)
    wcb = wcb.at[:, 3].set(bcat)
    wcb = wcb.at[:, 4].set(b2.astype(jnp.float32))
    wcb = wcb.at[:, 5].set(b3.astype(jnp.float32))
    wcb = wcb.at[0:20, 6].set(bf.astype(jnp.float32))

    return {
        "wcb": wcb,
        "w2t": w2.T.astype(jnp.float32),     # (60, 60)
        "w3t": w3.T.astype(jnp.float32),     # (60, 60)
        "wft": wf.T.astype(jnp.float32),     # (20, 60)
    }


def domain_enc_forward_packed(xin_t, packed, *, tb_max=4096):
    """xin_t: (3, B) feature-major packed [x[:,0]; x[:,1]; domain].
    Returns (20, B) feature-major output (no wrapper transposes)."""
    B = xin_t.shape[1]
    tb = _choose_tb(B, tb_max)
    Bp = _round_up(B, tb)
    if Bp != B:
        xin_t = jnp.pad(xin_t.astype(jnp.float32), ((0, 0), (0, Bp - B)))
    else:
        xin_t = xin_t.astype(jnp.float32)

    grid = (Bp // tb,)

    out_t = pl.pallas_call(
        _domain_enc_kernel,
        out_shape=jax.ShapeDtypeStruct((20, Bp), jnp.float32),
        grid=grid,
        in_specs=[
            pl.BlockSpec((3, tb), lambda i: (0, i)),     # xin: tiled over batch (lanes)
            pl.BlockSpec((60, 8), lambda i: (0, 0)),     # packed wcat + biases: resident
            pl.BlockSpec((60, 60), lambda i: (0, 0)),    # w2t
            pl.BlockSpec((60, 60), lambda i: (0, 0)),    # w3t
            pl.BlockSpec((20, 60), lambda i: (0, 0)),    # wft
        ],
        out_specs=pl.BlockSpec((20, tb), lambda i: (0, i)),
        compiler_params=pltpu.CompilerParams(
            dimension_semantics=("parallel",)),
    )(xin_t, packed["wcb"], packed["w2t"], packed["w3t"], packed["wft"])

    return out_t[:, :B]


def domain_enc_forward(x, domain, packed, *, tb_max=4096):
    """Convenience wrapper matching the PyTorch module I/O:
    x: (B, 2), domain: (B,). Returns (B, 20)."""
    B = x.shape[0]
    xin_t = jnp.concatenate(
        [x.astype(jnp.float32).T, domain.reshape(1, B).astype(jnp.float32)],
        axis=0)                                           # (3, B)
    out_t = domain_enc_forward_packed(xin_t, packed, tb_max=tb_max)
    return out_t.T                                        # (B, 20)


def _init_linear(key, fan_in, fan_out):
    """Deterministic init mimicking torch.nn.Linear (uniform +/- 1/sqrt(fan_in)).
    Weight returned as (in, out) so the reference computes x @ W + b."""
    kw, kb = jax.random.split(key)
    bound = 1.0 / (fan_in ** 0.5)
    w = jax.random.uniform(kw, (fan_in, fan_out), jnp.float32, -bound, bound)
    b = jax.random.uniform(kb, (fan_out,), jnp.float32, -bound, bound)
    return w, b


def init_params(key):
    k1, k2, k3, k4, k5 = jax.random.split(key, 5)
    return {
        "fc1": _init_linear(k1, 2, 50),
        "fc2": _init_linear(k2, 60, 60),
        "fc3": _init_linear(k3, 60, 60),
        "fc_final": _init_linear(k4, 60, 20),
        "fc1_var": _init_linear(k5, 1, 10),
    }


def _reference_forward(x, domain, params):
    """Pure-JAX reference matching the PyTorch module exactly."""
    w1, b1 = params["fc1"]
    w1v, b1v = params["fc1_var"]
    w2, b2 = params["fc2"]
    w3, b3 = params["fc3"]
    wf, bf = params["fc_final"]
    dom = domain[:, None]
    xd = jax.nn.relu(dom @ w1v + b1v)
    h = jax.nn.relu(x @ w1 + b1)
    h = jnp.concatenate([h, xd], axis=1)
    h = jax.nn.relu(jax.nn.relu(h @ w2 + b2) @ w3 + b3)
    return jax.nn.relu(h @ wf + bf)


if __name__ == "__main__":
    key = jax.random.PRNGKey(0)
    kp, kx, kd = jax.random.split(key, 3)

    params = init_params(kp)
    packed = prepare_params(params)

    # Small deterministic example.
    B = 8
    x = jax.random.normal(kx, (B, 2), jnp.float32)
    domain = jax.random.uniform(kd, (B,), jnp.float32)

    out = domain_enc_forward(x, domain, packed)
    out = jax.block_until_ready(out)

    ref = _reference_forward(x, domain, params)
    assert out.shape == (B, 20)
    assert jnp.allclose(out, ref, atol=1e-5, rtol=1e-5), "mismatch vs reference"

    # Exercise the non-aligned batch path (wrapper lane padding / slicing).
    B2 = 13
    x2 = jax.random.normal(kx, (B2, 2), jnp.float32)
    d2 = jax.random.uniform(kd, (B2,), jnp.float32)
    out2 = jax.block_until_ready(domain_enc_forward(x2, d2, packed))
    ref2 = _reference_forward(x2, d2, params)
    assert out2.shape == (B2, 20)
    assert jnp.allclose(out2, ref2, atol=1e-5, rtol=1e-5), "mismatch (padded batch)"

    print("KERNEL_OK")
</pallas_src>

<mosaic_0001>
module attributes {stable_mosaic.version = 11 : i64} {
  func.func @_domain_enc_kernel(%arg0: i32, %arg1: memref<3x256xf32, #tpu.memory_space<vmem>>, %arg2: memref<60x8xf32, #tpu.memory_space<vmem>>, %arg3: memref<60x60xf32, #tpu.memory_space<vmem>>, %arg4: memref<60x60xf32, #tpu.memory_space<vmem>>, %arg5: memref<20x60xf32, #tpu.memory_space<vmem>>, %arg6: memref<20x256xf32, #tpu.memory_space<vmem>>) attributes {dimension_semantics = [#tpu.dimension_semantics<parallel>], iteration_bounds = array<i64: 1>, scalar_prefetch = 0 : i64, scratch_operands = 0 : i64, tpu.core_type = #tpu.core_type<tc>, window_params = [{transform_indices = @transform_0, window_bounds = array<i64: 3, 256>}, {pipeline_mode = #tpu.pipeline_mode<synchronous>, transform_indices = @transform_1, window_bounds = array<i64: 60, 8>}, {pipeline_mode = #tpu.pipeline_mode<synchronous>, transform_indices = @transform_2, window_bounds = array<i64: 60, 60>}, {pipeline_mode = #tpu.pipeline_mode<synchronous>, transform_indices = @transform_3, window_bounds = array<i64: 60, 60>}, {pipeline_mode = #tpu.pipeline_mode<synchronous>, transform_indices = @transform_4, window_bounds = array<i64: 20, 60>}, {transform_indices = @transform_5, window_bounds = array<i64: 20, 256>}]} {
    %c0 = arith.constant 0 : index
    %c0_0 = arith.constant 0 : index
    %0 = vector.load %arg1[%c0, %c0_0] : memref<3x256xf32, #tpu.memory_space<vmem>>, vector<1x256xf32>
    %c1 = arith.constant 1 : index
    %c0_1 = arith.constant 0 : index
    %1 = vector.load %arg1[%c1, %c0_1] : memref<3x256xf32, #tpu.memory_space<vmem>>, vector<1x256xf32>
    %c2 = arith.constant 2 : index
    %c0_2 = arith.constant 0 : index
    %2 = vector.load %arg1[%c2, %c0_2] : memref<3x256xf32, #tpu.memory_space<vmem>>, vector<1x256xf32>
    %c0_3 = arith.constant 0 : index
    %c0_4 = arith.constant 0 : index
    %3 = vector.load %arg2[%c0_3, %c0_4] : memref<60x8xf32, #tpu.memory_space<vmem>>, vector<60x8xf32>
    %4 = vector.extract_strided_slice %3 {offsets = [0, 0], sizes = [60, 1], strides = [1, 1]} : vector<60x8xf32> to vector<60x1xf32>
    %5 = vector.extract_strided_slice %3 {offsets = [0, 1], sizes = [60, 1], strides = [1, 1]} : vector<60x8xf32> to vector<60x1xf32>
    %6 = vector.extract_strided_slice %3 {offsets = [0, 2], sizes = [60, 1], strides = [1, 1]} : vector<60x8xf32> to vector<60x1xf32>
    %7 = vector.extract_strided_slice %3 {offsets = [0, 3], sizes = [60, 1], strides = [1, 1]} : vector<60x8xf32> to vector<60x1xf32>
    %8 = vector.extract_strided_slice %3 {offsets = [0, 4], sizes = [60, 1], strides = [1, 1]} : vector<60x8xf32> to vector<60x1xf32>
    %9 = vector.extract_strided_slice %3 {offsets = [0, 5], sizes = [60, 1], strides = [1, 1]} : vector<60x8xf32> to vector<60x1xf32>
    %10 = vector.extract_strided_slice %3 {offsets = [0, 6], sizes = [20, 1], strides = [1, 1]} : vector<60x8xf32> to vector<20x1xf32>
    %11 = vector.broadcast %4 : vector<60x1xf32> to vector<60x256xf32>
    %12 = vector.broadcast %0 : vector<1x256xf32> to vector<60x256xf32>
    %13 = arith.mulf %11, %12 : vector<60x256xf32>
    %14 = vector.broadcast %5 : vector<60x1xf32> to vector<60x256xf32>
    %15 = vector.broadcast %1 : vector<1x256xf32> to vector<60x256xf32>
    %16 = arith.mulf %14, %15 : vector<60x256xf32>
    %17 = arith.addf %13, %16 : vector<60x256xf32>
    %18 = vector.broadcast %6 : vector<60x1xf32> to vector<60x256xf32>
    %19 = vector.broadcast %2 : vector<1x256xf32> to vector<60x256xf32>
    %20 = arith.mulf %18, %19 : vector<60x256xf32>
    %21 = arith.addf %17, %20 : vector<60x256xf32>
    %22 = vector.broadcast %7 : vector<60x1xf32> to vector<60x256xf32>
    %23 = arith.addf %21, %22 : vector<60x256xf32>
    %cst = arith.constant 0.000000e+00 : f32
    %24 = vector.broadcast %cst : f32 to vector<60x256xf32>
    %25 = arith.maximumf %23, %24 : vector<60x256xf32>
    %c0_5 = arith.constant 0 : index
    %c0_6 = arith.constant 0 : index
    %26 = vector.load %arg3[%c0_5, %c0_6] : memref<60x60xf32, #tpu.memory_space<vmem>>, vector<60x60xf32>
    %cst_7 = arith.constant dense<0.000000e+00> : vector<60x256xf32>
    %27 = tpu.matmul %26, %25, %cst_7 {dimension_numbers = #tpu.dot_dimension_numbers<[1], [0], [0], [1], [0, 0, 1, 1], [], []>} : vector<60x60xf32>, vector<60x256xf32>, vector<60x256xf32> -> vector<60x256xf32>
    %28 = vector.broadcast %8 : vector<60x1xf32> to vector<60x256xf32>
    %29 = arith.addf %27, %28 : vector<60x256xf32>
    %cst_8 = arith.constant 0.000000e+00 : f32
    %30 = vector.broadcast %cst_8 : f32 to vector<60x256xf32>
    %31 = arith.maximumf %29, %30 : vector<60x256xf32>
    %c0_9 = arith.constant 0 : index
    %c0_10 = arith.constant 0 : index
    %32 = vector.load %arg4[%c0_9, %c0_10] : memref<60x60xf32, #tpu.memory_space<vmem>>, vector<60x60xf32>
    %cst_11 = arith.constant dense<0.000000e+00> : vector<60x256xf32>
    %33 = tpu.matmul %32, %31, %cst_11 {dimension_numbers = #tpu.dot_dimension_numbers<[1], [0], [0], [1], [0, 0, 1, 1], [], []>} : vector<60x60xf32>, vector<60x256xf32>, vector<60x256xf32> -> vector<60x256xf32>
    %34 = vector.broadcast %9 : vector<60x1xf32> to vector<60x256xf32>
    %35 = arith.addf %33, %34 : vector<60x256xf32>
    %cst_12 = arith.constant 0.000000e+00 : f32
    %36 = vector.broadcast %cst_12 : f32 to vector<60x256xf32>
    %37 = arith.maximumf %35, %36 : vector<60x256xf32>
    %c0_13 = arith.constant 0 : index
    %c0_14 = arith.constant 0 : index
    %38 = vector.load %arg5[%c0_13, %c0_14] : memref<20x60xf32, #tpu.memory_space<vmem>>, vector<20x60xf32>
    %cst_15 = arith.constant dense<0.000000e+00> : vector<20x256xf32>
    %39 = tpu.matmul %38, %37, %cst_15 {dimension_numbers = #tpu.dot_dimension_numbers<[1], [0], [0], [1], [0, 0, 1, 1], [], []>} : vector<20x60xf32>, vector<60x256xf32>, vector<20x256xf32> -> vector<20x256xf32>
    %40 = vector.broadcast %10 : vector<20x1xf32> to vector<20x256xf32>
    %41 = arith.addf %39, %40 : vector<20x256xf32>
    %cst_16 = arith.constant 0.000000e+00 : f32
    %42 = vector.broadcast %cst_16 : f32 to vector<20x256xf32>
    %43 = arith.maximumf %41, %42 : vector<20x256xf32>
    %c0_17 = arith.constant 0 : index
    %c0_18 = arith.constant 0 : index
    %44 = vector.load %arg6[%c0_17, %c0_18] : memref<20x256xf32, #tpu.memory_space<vmem>>, vector<20x256xf32>
    tpu.vector_store %arg6[%c0_17, %c0_18], %43 {strides = array<i32>} : memref<20x256xf32, #tpu.memory_space<vmem>>, vector<20x256xf32>,
    return
  }
  func.func @transform_0(%arg0: i32) -> (i32, i32) {
    %c0_i32 = arith.constant 0 : i32
    %c0_i32_0 = arith.constant 0 : i32
    return %c0_i32, %arg0 : i32, i32
  }
  func.func @transform_1(%arg0: i32) -> (i32, i32) {
    %c0_i32 = arith.constant 0 : i32
    %c0_i32_0 = arith.constant 0 : i32
    %c0_i32_1 = arith.constant 0 : i32
    return %c0_i32, %c0_i32_0 : i32, i32
  }
  func.func @transform_2(%arg0: i32) -> (i32, i32) {
    %c0_i32 = arith.constant 0 : i32
    %c0_i32_0 = arith.constant 0 : i32
    %c0_i32_1 = arith.constant 0 : i32
    return %c0_i32, %c0_i32_0 : i32, i32
  }
  func.func @transform_3(%arg0: i32) -> (i32, i32) {
    %c0_i32 = arith.constant 0 : i32
    %c0_i32_0 = arith.constant 0 : i32
    %c0_i32_1 = arith.constant 0 : i32
    return %c0_i32, %c0_i32_0 : i32, i32
  }
  func.func @transform_4(%arg0: i32) -> (i32, i32) {
    %c0_i32 = arith.constant 0 : i32
    %c0_i32_0 = arith.constant 0 : i32
    %c0_i32_1 = arith.constant 0 : i32
    return %c0_i32, %c0_i32_0 : i32, i32
  }
  func.func @transform_5(%arg0: i32) -> (i32, i32) {
    %c0_i32 = arith.constant 0 : i32
    %c0_i32_0 = arith.constant 0 : i32
    return %c0_i32, %arg0 : i32, i32
  }
}

</mosaic_0001>

<llo_original>
// kernel: tpu_custom_call.1
$region0: #{tpu_custom_call.1}
  #allocation0 [shape = 'u32[]', space=smem, size = 0x4, offset = 0x4, fixed_abs, tag = 'smem constant byte address 0x4 - core index']
  #allocation1 [shape = 'u32[72,128]{1,0:T(1,128)}', space=vmem, size = 0x9000, scoped, tag = 'internal scratch']
  %s0 = inlined_call_operand.vmem [shape: f32[3,256], index: 0, kind: input, shape index: {}]
  %s1 = inlined_call_operand.vmem [shape: f32[60,8], index: 1, kind: input, shape index: {}]
  %s2 = inlined_call_operand.vmem [shape: f32[60,60], index: 2, kind: input, shape index: {}]
  %s3 = inlined_call_operand.hbm [shape: f32[60,60], index: 3, kind: input, shape index: {}]
  %s4 = inlined_call_operand.hbm [shape: f32[20,60], index: 4, kind: input, shape index: {}]
  %s5 = inlined_call_operand.hbm [shape: f32[20,256], index: 5, kind: output, shape index: {}]
  %s6 = sld [smem:[#allocation0]]
  $region38: #{tpu_custom_call.1} parent=0
    _
  %s8 = ssub.s32 1, %s6
  %s9 = scalar_select 0, %s8, %s6
  $region1: #{tpu_custom_call.1} parent=0
    #allocation2 [shape = 'u8[32768]{0}', space=vmem, size = 0x8000, scoped, tag = 'input window, operand 3, single buffered']
    #allocation3 [shape = 's32[1]{0}', space=sflag, size = 0x4, scoped, tag = 'scoped memory for tpu_custom_call.1']
    #allocation4 [shape = 's32[1]{0}', space=sflag, size = 0x4, scoped, tag = 'scoped memory for tpu_custom_call.1']
    #allocation5 [shape = 'u8[12288]{0}', space=vmem, size = 0x3000, scoped, tag = 'input window, operand 4, single buffered']
    #allocation6 [shape = 's32[1]{0}', space=sflag, size = 0x4, scoped, tag = 'scoped memory for tpu_custom_call.1']
    #allocation7 [shape = 'u8[24576]{0}', space=vmem, size = 0x6000, scoped, tag = 'output window, operand 0, single buffered']
    %10 = vsyncpa [#allocation3], 0
    %11 = vsyncpa [#allocation6], 0
    %12 = vsyncpa [#allocation4], 0
    // Predicated region
    $region2: #{tpu_custom_call.1} parent=1 // pred_check
      _
    $region3: #{tpu_custom_call.1} parent=1 // pred_check_branch
      %14 = sbr.rel (0) target = $region5
    $region4: #{tpu_custom_call.1} parent=1 // pred_region
      _
    $region5: #{tpu_custom_call.1} parent=1 // pred_fallthru
      _
    // Predicated region
    $region6: #{tpu_custom_call.1} parent=1 // pred_check
      _
    $region7: #{tpu_custom_call.1} parent=1 // pred_check_branch
      %16 = sbr.rel (0) target = $region9
    $region8: #{tpu_custom_call.1} parent=1 // pred_region
      _
    $region9: #{tpu_custom_call.1} parent=1 // pred_fallthru
      _
    // Predicated region
    $region10: #{tpu_custom_call.1} parent=1 // pred_check
      _
    $region11: #{tpu_custom_call.1} parent=1 // pred_check_branch
      %18 = sbr.rel (0) target = $region13
    $region12: #{tpu_custom_call.1} parent=1 // pred_region
      _
    $region13: #{tpu_custom_call.1} parent=1 // pred_fallthru
      _
    // Predicated region
    $region14: #{tpu_custom_call.1} parent=1 // pred_check
      _
    $region15: #{tpu_custom_call.1} parent=1 // pred_check_branch
      %20 = sbr.rel (0) target = $region17
    $region16: #{tpu_custom_call.1} parent=1 // pred_region
      %22 = vsyncadd [#allocation3], 0
      %s23 = sshll.u32 %s3, 4
      %s24 = int_to_ptr.hbm [resolvable:$true] %s23
      %s25 = sshll.u32 [#allocation2], 4
      %s26 = int_to_ptr.vmem [resolvable:$true] %s25
      %31 = dma.hbm_to_vmem [thread:$0]  %s24, 1024, %s26, [#allocation3], 128, 128, 8
    $region17: #{tpu_custom_call.1} parent=1 // pred_fallthru
      _
    // Predicated region
    $region18: #{tpu_custom_call.1} parent=1 // pred_check
      _
    $region19: #{tpu_custom_call.1} parent=1 // pred_check_branch
      %33 = sbr.rel (0) target = $region21
    $region20: #{tpu_custom_call.1} parent=1 // pred_region
      %35 = vsyncadd [#allocation6], 0
      %s36 = sshll.u32 %s4, 4
      %s37 = int_to_ptr.hbm [resolvable:$true] %s36
      %s38 = sshll.u32 [#allocation5], 4
      %s39 = int_to_ptr.vmem [resolvable:$true] %s38
      %44 = dma.hbm_to_vmem [thread:$0]  %s37, 384, %s39, [#allocation6], 128, 128, 8
    $region21: #{tpu_custom_call.1} parent=1 // pred_fallthru
      _
    // Predicated region
    $region22: #{tpu_custom_call.1} parent=1 // pred_check
      _
    $region23: #{tpu_custom_call.1} parent=1 // pred_check_branch
      %46 = sbr.rel (0) target = $region25
    $region24: #{tpu_custom_call.1} parent=1 // pred_region
      %48 = dma.done [#allocation3], 1024
    $region25: #{tpu_custom_call.1} parent=1 // pred_fallthru
      _
    // Predicated region
    $region26: #{tpu_custom_call.1} parent=1 // pred_check
      _
    $region27: #{tpu_custom_call.1} parent=1 // pred_check_branch
      %50 = sbr.rel (0) target = $region29
    $region28: #{tpu_custom_call.1} parent=1 // pred_region
      %52 = dma.done [#allocation6], 384
    $region29: #{tpu_custom_call.1} parent=1 // pred_fallthru
      _
    %v53 = vld [vmem:[%s0] ss:$4 sm:$0x3]
    %s54 = scalar_lea.vmem %s0, 1
    %v55 = vld [vmem:[%s54] ss:$4 sm:$0x3]
    %s56 = scalar_lea.vmem %s0, 2
    %v57 = vld [vmem:[%s56] ss:$4 sm:$0x3]
    %v58 = vld [vmem:[%s1] sm:$0xff]
    %v59 = vld [vmem:[%s1 + $0x8] sm:$0xff]
    %v60 = vld [vmem:[%s1 + $0x10] sm:$0xff]
    %v61 = vld [vmem:[%s1 + $0x18] sm:$0xff]
    %v62 = vld [vmem:[%s1 + $0x20] sm:$0xff]
    %v63 = vld [vmem:[%s1 + $0x28] sm:$0xff]
    %v64 = vld [vmem:[%s1 + $0x30] sm:$0xff]
    %v65 = vld [vmem:[%s1 + $0x38] sm:$0xf]
    %67 = vset.pattern.permute.xlu0 0
    %68 = vperm.xlu0 %67, %v58
    %v69 = vpop.permute.xlu0 %68
    %72 = vset.pattern.permute.xlu0 0
    %73 = vperm.xlu0 %72, %v59
    %v74 = vpop.permute.xlu0 %73
    %77 = vset.pattern.permute.xlu0 0
    %78 = vperm.xlu0 %77, %v60
    %v79 = vpop.permute.xlu0 %78
    %82 = vset.pattern.permute.xlu0 0
    %83 = vperm.xlu0 %82, %v61
    %v84 = vpop.permute.xlu0 %83
    %87 = vset.pattern.permute.xlu0 0
    %88 = vperm.xlu0 %87, %v62
    %v89 = vpop.permute.xlu0 %88
    %92 = vset.pattern.permute.xlu0 0
    %93 = vperm.xlu0 %92, %v63
    %v94 = vpop.permute.xlu0 %93
    %97 = vset.pattern.permute.xlu0 0
    %98 = vperm.xlu0 %97, %v64
    %v99 = vpop.permute.xlu0 %98
    %102 = vset.pattern.permute.xlu0 0
    %103 = vperm.xlu0 %102, %v65
    %v104 = vpop.permute.xlu0 %103
    %v107 = vperm.slane %v53, 0
    %v108 = vperm.slane %v53, 1
    %v111 = vmul.f32 %v69, %v107
    %v112 = vmul.f32 %v69, %v108
    %v113 = vmul.f32 %v74, %v107
    %v114 = vmul.f32 %v74, %v108
    %v115 = vmul.f32 %v79, %v107
    %v116 = vmul.f32 %v79, %v108
    %v117 = vmul.f32 %v84, %v107
    %v118 = vmul.f32 %v84, %v108
    %v119 = vmul.f32 %v89, %v107
    %v120 = vmul.f32 %v89, %v108
    %v121 = vmul.f32 %v94, %v107
    %v122 = vmul.f32 %v94, %v108
    %v123 = vmul.f32 %v99, %v107
    %v124 = vmul.f32 %v99, %v108
    %v125 = vmul.f32 %v104, %v107
    %v126 = vmul.f32 %v104, %v108
    %127 = vset.pattern.permute.xlu0 1
    %128 = vperm.xlu0 %127, %v58
    %v129 = vpop.permute.xlu0 %128
    %131 = vset.pattern.permute.xlu0 1
    %132 = vperm.xlu0 %131, %v59
    %v133 = vpop.permute.xlu0 %132
    %135 = vset.pattern.permute.xlu0 1
    %136 = vperm.xlu0 %135, %v60
    %v137 = vpop.permute.xlu0 %136
    %139 = vset.pattern.permute.xlu0 1
    %140 = vperm.xlu0 %139, %v61
    %v141 = vpop.permute.xlu0 %140
    %143 = vset.pattern.permute.xlu0 1
    %144 = vperm.xlu0 %143, %v62
    %v145 = vpop.permute.xlu0 %144
    %147 = vset.pattern.permute.xlu0 1
    %148 = vperm.xlu0 %147, %v63
    %v149 = vpop.permute.xlu0 %148
    %151 = vset.pattern.permute.xlu0 1
    %152 = vperm.xlu0 %151, %v64
    %v153 = vpop.permute.xlu0 %152
    %155 = vset.pattern.permute.xlu0 1
    %156 = vperm.xlu0 %155, %v65
    %v157 = vpop.permute.xlu0 %156
    %v160 = vperm.slane %v55, 0
    %v161 = vperm.slane %v55, 1
    %v164 = vmul.f32 %v129, %v160
    %v165 = vmul.f32 %v129, %v161
    %v166 = vmul.f32 %v133, %v160
    %v167 = vmul.f32 %v133, %v161
    %v168 = vmul.f32 %v137, %v160
    %v169 = vmul.f32 %v137, %v161
    %v170 = vmul.f32 %v141, %v160
    %v171 = vmul.f32 %v141, %v161
    %v172 = vmul.f32 %v145, %v160
    %v173 = vmul.f32 %v145, %v161
    %v174 = vmul.f32 %v149, %v160
    %v175 = vmul.f32 %v149, %v161
    %v176 = vmul.f32 %v153, %v160
    %v177 = vmul.f32 %v153, %v161
    %v178 = vmul.f32 %v157, %v160
    %v179 = vmul.f32 %v157, %v161
    %v180 = vadd.f32 %v111, %v164
    %v181 = vadd.f32 %v112, %v165
    %v182 = vadd.f32 %v113, %v166
    %v183 = vadd.f32 %v114, %v167
    %v184 = vadd.f32 %v115, %v168
    %v185 = vadd.f32 %v116, %v169
    %v186 = vadd.f32 %v117, %v170
    %v187 = vadd.f32 %v118, %v171
    %v188 = vadd.f32 %v119, %v172
    %v189 = vadd.f32 %v120, %v173
    %v190 = vadd.f32 %v121, %v174
    %v191 = vadd.f32 %v122, %v175
    %v192 = vadd.f32 %v123, %v176
    %v193 = vadd.f32 %v124, %v177
    %v194 = vadd.f32 %v125, %v178
    %v195 = vadd.f32 %v126, %v179
    %196 = vset.pattern.permute.xlu0 2
    %197 = vperm.xlu0 %196, %v58
    %v198 = vpop.permute.xlu0 %197
    %200 = vset.pattern.permute.xlu0 2
    %201 = vperm.xlu0 %200, %v59
    %v202 = vpop.permute.xlu0 %201
    %204 = vset.pattern.permute.xlu0 2
    %205 = vperm.xlu0 %204, %v60
    %v206 = vpop.permute.xlu0 %205
    %208 = vset.pattern.permute.xlu0 2
    %209 = vperm.xlu0 %208, %v61
    %v210 = vpop.permute.xlu0 %209
    %212 = vset.pattern.permute.xlu0 2
    %213 = vperm.xlu0 %212, %v62
    %v214 = vpop.permute.xlu0 %213
    %216 = vset.pattern.permute.xlu0 2
    %217 = vperm.xlu0 %216, %v63
    %v218 = vpop.permute.xlu0 %217
    %220 = vset.pattern.permute.xlu0 2
    %221 = vperm.xlu0 %220, %v64
    %v222 = vpop.permute.xlu0 %221
    %224 = vset.pattern.permute.xlu0 2
    %225 = vperm.xlu0 %224, %v65
    %v226 = vpop.permute.xlu0 %225
    %v229 = vperm.slane %v57, 0
    %v230 = vperm.slane %v57, 1
    %v233 = vmul.f32 %v198, %v229
    %v234 = vmul.f32 %v198, %v230
    %v235 = vmul.f32 %v202, %v229
    %v236 = vmul.f32 %v202, %v230
    %v237 = vmul.f32 %v206, %v229
    %v238 = vmul.f32 %v206, %v230
    %v239 = vmul.f32 %v210, %v229
    %v240 = vmul.f32 %v210, %v230
    %v241 = vmul.f32 %v214, %v229
    %v242 = vmul.f32 %v214, %v230
    %v243 = vmul.f32 %v218, %v229
    %v244 = vmul.f32 %v218, %v230
    %v245 = vmul.f32 %v222, %v229
    %v246 = vmul.f32 %v222, %v230
    %v247 = vmul.f32 %v226, %v229
    %v248 = vmul.f32 %v226, %v230
    %v249 = vadd.f32 %v180, %v233
    %v250 = vadd.f32 %v181, %v234
    %v251 = vadd.f32 %v182, %v235
    %v252 = vadd.f32 %v183, %v236
    %v253 = vadd.f32 %v184, %v237
    %v254 = vadd.f32 %v185, %v238
    %v255 = vadd.f32 %v186, %v239
    %v256 = vadd.f32 %v187, %v240
    %v257 = vadd.f32 %v188, %v241
    %v258 = vadd.f32 %v189, %v242
    %v259 = vadd.f32 %v190, %v243
    %v260 = vadd.f32 %v191, %v244
    %v261 = vadd.f32 %v192, %v245
    %v262 = vadd.f32 %v193, %v246
    %v263 = vadd.f32 %v194, %v247
    %v264 = vadd.f32 %v195, %v248
    %265 = vset.pattern.permute.xlu0 3
    %266 = vperm.xlu0 %265, %v58
    %v267 = vpop.permute.xlu0 %266
    %269 = vset.pattern.permute.xlu0 3
    %270 = vperm.xlu0 %269, %v59
    %v271 = vpop.permute.xlu0 %270
    %273 = vset.pattern.permute.xlu0 3
    %274 = vperm.xlu0 %273, %v60
    %v275 = vpop.permute.xlu0 %274
    %277 = vset.pattern.permute.xlu0 3
    %278 = vperm.xlu0 %277, %v61
    %v279 = vpop.permute.xlu0 %278
    %281 = vset.pattern.permute.xlu0 3
    %282 = vperm.xlu0 %281, %v62
    %v283 = vpop.permute.xlu0 %282
    %285 = vset.pattern.permute.xlu0 3
    %286 = vperm.xlu0 %285, %v63
    %v287 = vpop.permute.xlu0 %286
    %289 = vset.pattern.permute.xlu0 3
    %290 = vperm.xlu0 %289, %v64
    %v291 = vpop.permute.xlu0 %290
    %293 = vset.pattern.permute.xlu0 3
    %294 = vperm.xlu0 %293, %v65
    %v295 = vpop.permute.xlu0 %294
    %v297 = vadd.f32 %v249, %v267
    %v298 = vadd.f32 %v250, %v267
    %v299 = vadd.f32 %v251, %v271
    %v300 = vadd.f32 %v252, %v271
    %v301 = vadd.f32 %v253, %v275
    %v302 = vadd.f32 %v254, %v275
    %v303 = vadd.f32 %v255, %v279
    %v304 = vadd.f32 %v256, %v279
    %v305 = vadd.f32 %v257, %v283
    %v306 = vadd.f32 %v258, %v283
    %v307 = vadd.f32 %v259, %v287
    %v308 = vadd.f32 %v260, %v287
    %v309 = vadd.f32 %v261, %v291
    %v310 = vadd.f32 %v262, %v291
    %v311 = vadd.f32 %v263, %v295
    %v312 = vadd.f32 %v264, %v295
    %v313 = vmax.f32 %v297, 0.0
    %v314 = vmax.f32 %v298, 0.0
    %v315 = vmax.f32 %v299, 0.0
    %v316 = vmax.f32 %v300, 0.0
    %v317 = vmax.f32 %v301, 0.0
    %v318 = vmax.f32 %v302, 0.0
    %v319 = vmax.f32 %v303, 0.0
    %v320 = vmax.f32 %v304, 0.0
    %v321 = vmax.f32 %v305, 0.0
    %v322 = vmax.f32 %v306, 0.0
    %v323 = vmax.f32 %v307, 0.0
    %v324 = vmax.f32 %v308, 0.0
    %v325 = vmax.f32 %v309, 0.0
    %v326 = vmax.f32 %v310, 0.0
    %v327 = vmax.f32 %v311, 0.0
    %v328 = vmax.f32 %v312, 0.0
    %v329 = vld [vmem:[%s2] sm:$0xff]
    %v330 = vld [vmem:[%s2 + $0x8] sm:$0xff]
    %v331 = vld [vmem:[%s2 + $0x10] sm:$0xff]
    %v332 = vld [vmem:[%s2 + $0x18] sm:$0xff]
    %v333 = vld [vmem:[%s2 + $0x20] sm:$0xff]
    %v334 = vld [vmem:[%s2 + $0x28] sm:$0xff]
    %v335 = vld [vmem:[%s2 + $0x30] sm:$0xff]
    %v336 = vld [vmem:[%s2 + $0x38] sm:$0xf]
    %337 = vset.pattern.permute.xlu0 4
    %338 = vperm.xlu0 %337, %v58
    %v339 = vpop.permute.xlu0 %338
    %341 = vset.pattern.permute.xlu0 4
    %342 = vperm.xlu0 %341, %v59
    %v343 = vpop.permute.xlu0 %342
    %345 = vset.pattern.permute.xlu0 4
    %346 = vperm.xlu0 %345, %v60
    %v347 = vpop.permute.xlu0 %346
    %349 = vset.pattern.permute.xlu0 4
    %350 = vperm.xlu0 %349, %v61
    %v351 = vpop.permute.xlu0 %350
    %353 = vset.pattern.permute.xlu0 4
    %354 = vperm.xlu0 %353, %v62
    %v355 = vpop.permute.xlu0 %354
    %357 = vset.pattern.permute.xlu0 4
    %358 = vperm.xlu0 %357, %v63
    %v359 = vpop.permute.xlu0 %358
    %361 = vset.pattern.permute.xlu0 4
    %362 = vperm.xlu0 %361, %v64
    %v363 = vpop.permute.xlu0 %362
    %365 = vset.pattern.permute.xlu0 4
    %366 = vperm.xlu0 %365, %v65
    %v367 = vpop.permute.xlu0 %366
    %vm369 = vcmask 490496
    %v371 = vsel %vm369, %v329, 0
    %v374 = vsel %vm369, %v330, 0
    %v377 = vsel %vm369, %v331, 0
    %v380 = vsel %vm369, %v332, 0
    %v383 = vsel %vm369, %v333, 0
    %v386 = vsel %vm369, %v334, 0
    %v389 = vsel %vm369, %v335, 0
    %v392 = vsel %vm369, %v336, 0
    %vm394 = vcmask 1043456
    %v396 = vsel %vm394, %v327, 0
    %v399 = vsel %vm394, %v328, 0
    %401 = vmatpush.msra.mxu0 0.0
    %402 = vmatpush.msra.mxu0 0.0
    %403 = vmatpush.msra.mxu0 0.0
    %404 = vmatpush.msra.mxu0 0.0
    %405 = vmatpush.msra.mxu0 0.0
    %406 = vmatpush.msra.mxu0 0.0
    %407 = vmatpush.msra.mxu0 0.0
    %408 = vmatpush.msra.mxu0 0.0
    %409 = vmatpush.msra.mxu0 %v396
    %410 = vmatpush.msra.mxu0 %v325
    %411 = vmatpush.msra.mxu0 %v323
    %412 = vmatpush.msra.mxu0 %v321
    %413 = vmatpush.msra.mxu0 %v319
    %414 = vmatpush.msra.mxu0 %v317
    %415 = vmatpush.msra.mxu0 %v315
    %416 = vmatpush.msra.mxu0 %v313
    %417 = vmatmul.f32.gmra.mxu0 %v371
    %v418 = vpop.f32.mrf.mxu0
    %v419 = vadd.f32 %v339, %v418
    %420 = vmatmul.f32.gmra.mxu0 %v374
    %v421 = vpop.f32.mrf.mxu0
    %v422 = vadd.f32 %v343, %v421
    %423 = vmatmul.f32.gmra.mxu0 %v377
    %v424 = vpop.f32.mrf.mxu0
    %v425 = vadd.f32 %v347, %v424
    %426 = vmatmul.f32.gmra.mxu0 %v380
    %v427 = vpop.f32.mrf.mxu0
    %v428 = vadd.f32 %v351, %v427
    %429 = vmatmul.f32.gmra.mxu0 %v383
    %v430 = vpop.f32.mrf.mxu0
    %v431 = vadd.f32 %v355, %v430
    %432 = vmatmul.f32.gmra.mxu0 %v386
    %v433 = vpop.f32.mrf.mxu0
    %v434 = vadd.f32 %v359, %v433
    %435 = vmatmul.f32.gmra.mxu0 %v389
    %v436 = vpop.f32.mrf.mxu0
    %v437 = vadd.f32 %v363, %v436
    %438 = vmatmul.f32.gmra.mxu0 %v392
    %v439 = vpop.f32.mrf.mxu0
    %v440 = vadd.f32 %v367, %v439
    %441 = vdwg.mxu0
    %442 = vmatpush.msra.mxu0 0.0
    %443 = vmatpush.msra.mxu0 0.0
    %444 = vmatpush.msra.mxu0 0.0
    %445 = vmatpush.msra.mxu0 0.0
    %446 = vmatpush.msra.mxu0 0.0
    %447 = vmatpush.msra.mxu0 0.0
    %448 = vmatpush.msra.mxu0 0.0
    %449 = vmatpush.msra.mxu0 0.0
    %450 = vmatpush.msra.mxu0 %v399
    %451 = vmatpush.msra.mxu0 %v326
    %452 = vmatpush.msra.mxu0 %v324
    %453 = vmatpush.msra.mxu0 %v322
    %454 = vmatpush.msra.mxu0 %v320
    %455 = vmatpush.msra.mxu0 %v318
    %456 = vmatpush.msra.mxu0 %v316
    %457 = vmatpush.msra.mxu0 %v314
    %458 = vmatmul.f32.gmra.mxu0 %v371
    %v459 = vpop.f32.mrf.mxu0
    %v460 = vadd.f32 %v339, %v459
    %461 = vmatmul.f32.gmra.mxu0 %v374
    %v462 = vpop.f32.mrf.mxu0
    %v463 = vadd.f32 %v343, %v462
    %464 = vmatmul.f32.gmra.mxu0 %v377
    %v465 = vpop.f32.mrf.mxu0
    %v466 = vadd.f32 %v347, %v465
    %467 = vmatmul.f32.gmra.mxu0 %v380
    %v468 = vpop.f32.mrf.mxu0
    %v469 = vadd.f32 %v351, %v468
    %470 = vmatmul.f32.gmra.mxu0 %v383
    %v471 = vpop.f32.mrf.mxu0
    %v472 = vadd.f32 %v355, %v471
    %473 = vmatmul.f32.gmra.mxu0 %v386
    %v474 = vpop.f32.mrf.mxu0
    %v475 = vadd.f32 %v359, %v474
    %476 = vmatmul.f32.gmra.mxu0 %v389
    %v477 = vpop.f32.mrf.mxu0
    %v478 = vadd.f32 %v363, %v477
    %479 = vmatmul.f32.gmra.mxu0 %v392
    %v480 = vpop.f32.mrf.mxu0
    %v481 = vadd.f32 %v367, %v480
    %482 = vdwg.mxu0
    %v483 = vmax.f32 %v419, 0.0
    %v484 = vmax.f32 %v460, 0.0
    %v485 = vmax.f32 %v422, 0.0
    %v486 = vmax.f32 %v463, 0.0
    %v487 = vmax.f32 %v425, 0.0
    %v488 = vmax.f32 %v466, 0.0
    %v489 = vmax.f32 %v428, 0.0
    %v490 = vmax.f32 %v469, 0.0
    %v491 = vmax.f32 %v431, 0.0
    %v492 = vmax.f32 %v472, 0.0
    %v493 = vmax.f32 %v434, 0.0
    %v494 = vmax.f32 %v475, 0.0
    %v495 = vmax.f32 %v437, 0.0
    %v496 = vmax.f32 %v478, 0.0
    %v497 = vmax.f32 %v440, 0.0
    %v498 = vmax.f32 %v481, 0.0
    %v499 = vld [vmem:[#allocation2] sm:$0xff]
    %v500 = vld [vmem:[#allocation2 + $0x8] sm:$0xff]
    %v501 = vld [vmem:[#allocation2 + $0x10] sm:$0xff]
    %v502 = vld [vmem:[#allocation2 + $0x18] sm:$0xff]
    %v503 = vld [vmem:[#allocation2 + $0x20] sm:$0xff]
    %v504 = vld [vmem:[#allocation2 + $0x28] sm:$0xff]
    %v505 = vld [vmem:[#allocation2 + $0x30] sm:$0xff]
    %v506 = vld [vmem:[#allocation2 + $0x38] sm:$0xf]
    %507 = vset.pattern.permute.xlu0 5
    %508 = vperm.xlu0 %507, %v58
    %v509 = vpop.permute.xlu0 %508
    %511 = vset.pattern.permute.xlu0 5
    %512 = vperm.xlu0 %511, %v59
    %v513 = vpop.permute.xlu0 %512
    %515 = vset.pattern.permute.xlu0 5
    %516 = vperm.xlu0 %515, %v60
    %v517 = vpop.permute.xlu0 %516
    %519 = vset.pattern.permute.xlu0 5
    %520 = vperm.xlu0 %519, %v61
    %v521 = vpop.permute.xlu0 %520
    %523 = vset.pattern.permute.xlu0 5
    %524 = vperm.xlu0 %523, %v62
    %v525 = vpop.permute.xlu0 %524
    %527 = vset.pattern.permute.xlu0 5
    %528 = vperm.xlu0 %527, %v63
    %v529 = vpop.permute.xlu0 %528
    %531 = vset.pattern.permute.xlu0 5
    %532 = vperm.xlu0 %531, %v64
    %v533 = vpop.permute.xlu0 %532
    %535 = vset.pattern.permute.xlu0 5
    %536 = vperm.xlu0 %535, %v65
    %v537 = vpop.permute.xlu0 %536
    %v540 = vsel %vm369, %v499, 0
    %v543 = vsel %vm369, %v500, 0
    %v546 = vsel %vm369, %v501, 0
    %v549 = vsel %vm369, %v502, 0
    %v552 = vsel %vm369, %v503, 0
    %v555 = vsel %vm369, %v504, 0
    %v558 = vsel %vm369, %v505, 0
    %v561 = vsel %vm369, %v506, 0
    %v564 = vsel %vm394, %v497, 0
    %v567 = vsel %vm394, %v498, 0
    %569 = vmatpush.msra.mxu0 0.0
    %570 = vmatpush.msra.mxu0 0.0
    %571 = vmatpush.msra.mxu0 0.0
    %572 = vmatpush.msra.mxu0 0.0
    %573 = vmatpush.msra.mxu0 0.0
    %574 = vmatpush.msra.mxu0 0.0
    %575 = vmatpush.msra.mxu0 0.0
    %576 = vmatpush.msra.mxu0 0.0
    %577 = vmatpush.msra.mxu0 %v564
    %578 = vmatpush.msra.mxu0 %v495
    %579 = vmatpush.msra.mxu0 %v493
    %580 = vmatpush.msra.mxu0 %v491
    %581 = vmatpush.msra.mxu0 %v489
    %582 = vmatpush.msra.mxu0 %v487
    %583 = vmatpush.msra.mxu0 %v485
    %584 = vmatpush.msra.mxu0 %v483
    %585 = vmatmul.f32.gmra.mxu0 %v540
    %v586 = vpop.f32.mrf.mxu0
    %v587 = vadd.f32 %v509, %v586
    %588 = vmatmul.f32.gmra.mxu0 %v543
    %v589 = vpop.f32.mrf.mxu0
    %v590 = vadd.f32 %v513, %v589
    %591 = vmatmul.f32.gmra.mxu0 %v546
    %v592 = vpop.f32.mrf.mxu0
    %v593 = vadd.f32 %v517, %v592
    %594 = vmatmul.f32.gmra.mxu0 %v549
    %v595 = vpop.f32.mrf.mxu0
    %v596 = vadd.f32 %v521, %v595
    %597 = vmatmul.f32.gmra.mxu0 %v552
    %v598 = vpop.f32.mrf.mxu0
    %v599 = vadd.f32 %v525, %v598
    %600 = vmatmul.f32.gmra.mxu0 %v555
    %v601 = vpop.f32.mrf.mxu0
    %v602 = vadd.f32 %v529, %v601
    %603 = vmatmul.f32.gmra.mxu0 %v558
    %v604 = vpop.f32.mrf.mxu0
    %v605 = vadd.f32 %v533, %v604
    %606 = vmatmul.f32.gmra.mxu0 %v561
    %v607 = vpop.f32.mrf.mxu0
    %v608 = vadd.f32 %v537, %v607
    %609 = vdwg.mxu0
    %610 = vmatpush.msra.mxu0 0.0
    %611 = vmatpush.msra.mxu0 0.0
    %612 = vmatpush.msra.mxu0 0.0
    %613 = vmatpush.msra.mxu0 0.0
    %614 = vmatpush.msra.mxu0 0.0
    %615 = vmatpush.msra.mxu0 0.0
    %616 = vmatpush.msra.mxu0 0.0
    %617 = vmatpush.msra.mxu0 0.0
    %618 = vmatpush.msra.mxu0 %v567
    %619 = vmatpush.msra.mxu0 %v496
    %620 = vmatpush.msra.mxu0 %v494
    %621 = vmatpush.msra.mxu0 %v492
    %622 = vmatpush.msra.mxu0 %v490
    %623 = vmatpush.msra.mxu0 %v488
    %624 = vmatpush.msra.mxu0 %v486
    %625 = vmatpush.msra.mxu0 %v484
    %626 = vmatmul.f32.gmra.mxu0 %v540
    %v627 = vpop.f32.mrf.mxu0
    %v628 = vadd.f32 %v509, %v627
    %629 = vmatmul.f32.gmra.mxu0 %v543
    %v630 = vpop.f32.mrf.mxu0
    %v631 = vadd.f32 %v513, %v630
    %632 = vmatmul.f32.gmra.mxu0 %v546
    %v633 = vpop.f32.mrf.mxu0
    %v634 = vadd.f32 %v517, %v633
    %635 = vmatmul.f32.gmra.mxu0 %v549
    %v636 = vpop.f32.mrf.mxu0
    %v637 = vadd.f32 %v521, %v636
    %638 = vmatmul.f32.gmra.mxu0 %v552
    %v639 = vpop.f32.mrf.mxu0
    %v640 = vadd.f32 %v525, %v639
    %641 = vmatmul.f32.gmra.mxu0 %v555
    %v642 = vpop.f32.mrf.mxu0
    %v643 = vadd.f32 %v529, %v642
    %644 = vmatmul.f32.gmra.mxu0 %v558
    %v645 = vpop.f32.mrf.mxu0
    %v646 = vadd.f32 %v533, %v645
    %647 = vmatmul.f32.gmra.mxu0 %v561
    %v648 = vpop.f32.mrf.mxu0
    %v649 = vadd.f32 %v537, %v648
    %650 = vdwg.mxu0
    %v651 = vmax.f32 %v587, 0.0
    %v652 = vmax.f32 %v628, 0.0
    %v653 = vmax.f32 %v590, 0.0
    %v654 = vmax.f32 %v631, 0.0
    %v655 = vmax.f32 %v593, 0.0
    %v656 = vmax.f32 %v634, 0.0
    %v657 = vmax.f32 %v596, 0.0
    %v658 = vmax.f32 %v637, 0.0
    %v659 = vmax.f32 %v599, 0.0
    %v660 = vmax.f32 %v640, 0.0
    %v661 = vmax.f32 %v602, 0.0
    %v662 = vmax.f32 %v643, 0.0
    %v663 = vmax.f32 %v605, 0.0
    %v664 = vmax.f32 %v646, 0.0
    %v665 = vmax.f32 %v608, 0.0
    %v666 = vmax.f32 %v649, 0.0
    %v667 = vld [vmem:[#allocation5] sm:$0xff]
    %v668 = vld [vmem:[#allocation5 + $0x8] sm:$0xff]
    %v669 = vld [vmem:[#allocation5 + $0x10] sm:$0xf]
    %670 = vset.pattern.permute.xlu0 6
    %671 = vperm.xlu0 %670, %v58
    %v672 = vpop.permute.xlu0 %671
    %674 = vset.pattern.permute.xlu0 6
    %675 = vperm.xlu0 %674, %v59
    %v676 = vpop.permute.xlu0 %675
    %678 = vset.pattern.permute.xlu0 6
    %679 = vperm.xlu0 %678, %v60
    %v680 = vpop.permute.xlu0 %679
    %v683 = vsel %vm369, %v667, 0
    %v686 = vsel %vm369, %v668, 0
    %v689 = vsel %vm369, %v669, 0
    %v692 = vsel %vm394, %v665, 0
    %v695 = vsel %vm394, %v666, 0
    %697 = vmatpush.msra.mxu0 0.0
    %698 = vmatpush.msra.mxu0 0.0
    %699 = vmatpush.msra.mxu0 0.0
    %700 = vmatpush.msra.mxu0 0.0
    %701 = vmatpush.msra.mxu0 0.0
    %702 = vmatpush.msra.mxu0 0.0
    %703 = vmatpush.msra.mxu0 0.0
    %704 = vmatpush.msra.mxu0 0.0
    %705 = vmatpush.msra.mxu0 %v692
    %706 = vmatpush.msra.mxu0 %v663
    %707 = vmatpush.msra.mxu0 %v661
    %708 = vmatpush.msra.mxu0 %v659
    %709 = vmatpush.msra.mxu0 %v657
    %710 = vmatpush.msra.mxu0 %v655
    %711 = vmatpush.msra.mxu0 %v653
    %712 = vmatpush.msra.mxu0 %v651
    %713 = vmatmul.f32.gmra.mxu0 %v683
    %v714 = vpop.f32.mrf.mxu0
    %v715 = vadd.f32 %v672, %v714
    %716 = vmatmul.f32.gmra.mxu0 %v686
    %v717 = vpop.f32.mrf.mxu0
    %v718 = vadd.f32 %v676, %v717
    %719 = vmatmul.f32.gmra.mxu0 %v689
    %v720 = vpop.f32.mrf.mxu0
    %v721 = vadd.f32 %v680, %v720
    %722 = vdwg.mxu0
    %723 = vmatpush.msra.mxu0 0.0
    %724 = vmatpush.msra.mxu0 0.0
    %725 = vmatpush.msra.mxu0 0.0
    %726 = vmatpush.msra.mxu0 0.0
    %727 = vmatpush.msra.mxu0 0.0
    %728 = vmatpush.msra.mxu0 0.0
    %729 = vmatpush.msra.mxu0 0.0
    %730 = vmatpush.msra.mxu0 0.0
    %731 = vmatpush.msra.mxu0 %v695
    %732 = vmatpush.msra.mxu0 %v664
    %733 = vmatpush.msra.mxu0 %v662
    %734 = vmatpush.msra.mxu0 %v660
    %735 = vmatpush.msra.mxu0 %v658
    %736 = vmatpush.msra.mxu0 %v656
    %737 = vmatpush.msra.mxu0 %v654
    %738 = vmatpush.msra.mxu0 %v652
    %739 = vmatmul.f32.gmra.mxu0 %v683
    %v740 = vpop.f32.mrf.mxu0
    %v741 = vadd.f32 %v672, %v740
    %742 = vmatmul.f32.gmra.mxu0 %v686
    %v743 = vpop.f32.mrf.mxu0
    %v744 = vadd.f32 %v676, %v743
    %745 = vmatmul.f32.gmra.mxu0 %v689
    %v746 = vpop.f32.mrf.mxu0
    %v747 = vadd.f32 %v680, %v746
    %748 = vdwg.mxu0
    %v749 = vmax.f32 %v715, 0.0
    %v750 = vmax.f32 %v741, 0.0
    %v751 = vmax.f32 %v718, 0.0
    %v752 = vmax.f32 %v744, 0.0
    %v753 = vmax.f32 %v721, 0.0
    %v754 = vmax.f32 %v747, 0.0
    %755 = vst [vmem:[#allocation7] sm:$0xff] %v749
    %756 = vst [vmem:[#allocation7 + $0x8] sm:$0xff] %v750
    %757 = vst [vmem:[#allocation7 + $0x10] sm:$0xff] %v751
    %758 = vst [vmem:[#allocation7 + $0x18] sm:$0xff] %v752
    %759 = vst [vmem:[#allocation7 + $0x20] sm:$0xf] %v753
    %760 = vst [vmem:[#allocation7 + $0x28] sm:$0xf] %v754
    // Predicated region
    $region30: #{tpu_custom_call.1} parent=1 // pred_check
      _
    $region31: #{tpu_custom_call.1} parent=1 // pred_check_branch
      %762 = sbr.rel (0) target = $region33
    $region32: #{tpu_custom_call.1} parent=1 // pred_region
      %764 = vsyncadd [#allocation4], 0
      %s765 = sshll.u32 [#allocation7], 4
      %s766 = int_to_ptr.vmem [resolvable:$true] %s765
      %s767 = sshll.u32 %s5, 4
      %s768 = int_to_ptr.hbm [resolvable:$true] %s767
      %773 = dma.vmem_to_hbm [thread:$0]  %s766, 768, %s768, [#allocation4], 256, 256, 16
    $region33: #{tpu_custom_call.1} parent=1 // pred_fallthru
      _
    // Predicated region
    $region34: #{tpu_custom_call.1} parent=1 // pred_check
      _
    $region35: #{tpu_custom_call.1} parent=1 // pred_check_branch
      %775 = sbr.rel (0) target = $region37
    $region36: #{tpu_custom_call.1} parent=1 // pred_region
      %777 = dma.done [#allocation4], 768
    $region37: #{tpu_custom_call.1} parent=1 // pred_fallthru
      _
    %778 = vsyncpa [#allocation3], 1
    %779 = vsyncpa [#allocation6], 1
    %780 = vsyncpa [#allocation4], 1

</llo_original>
